<compile_context>
chip_gen: v6e
topology: v6e:2x2x1
jax: 0.10.0
libtpu: 0.0.40
codegen_flags: <defaults>
</compile_context>

<pallas_src>
import math

import jax
import jax.numpy as jnp
from jax.experimental import pallas as pl
from jax.experimental.pallas import tpu as pltpu


# ---------------------------------------------------------------------------
# Tile-size selection helpers
# ---------------------------------------------------------------------------

def _chip_tile_budget():
    """(per-input-buffer tile bytes, vmem_limit_bytes) tuned per TPU generation.

    v5e/v6e have 128 MiB physical VMEM -> ~14 MiB/buffer, 64 MiB scoped limit.
    v7x has only 64 MiB physical VMEM  -> ~10 MiB/buffer, 44 MiB scoped limit.
    Unknown / query failure -> the conservative (v7x-safe) sizing.
    """
    vmem_cap = None
    try:
        info = pltpu.get_tpu_info()
        vmem_cap = (getattr(info, "vmem_capacity_bytes", None)
                    or getattr(info, "vmem_size_bytes", None))
    except Exception:
        vmem_cap = None
    if vmem_cap is not None and vmem_cap >= 100 * 1024 * 1024:
        return 14 * 1024 * 1024, 64 * 1024 * 1024
    return 10 * 1024 * 1024, 44 * 1024 * 1024


def _pick_lane_tile(d_total, cap):
    """Largest multiple-of-128 divisor of d_total that is <= cap, else d_total."""
    if d_total % 128 != 0 or d_total <= cap:
        return d_total
    c = (min(cap, d_total) // 128) * 128
    while c >= 128:
        if d_total % c == 0:
            return c
        c -= 128
    return d_total


def _pick_seq_tile(total, align, cap):
    """Sequence-axis tile: prefer an `align`-multiple divisor of `total` <= cap
    (no partial tiles); otherwise return the aligned cap and let the kernel
    mask the tail tile (keeps the tile bounded for awkward/prime N)."""
    if total <= cap:
        return total                       # full extent: always layout-legal
    d = (cap // align) * align
    while d >= align:
        if total % d == 0:
            return d
        d -= align
    return max((cap // align) * align, align)


# ---------------------------------------------------------------------------
# Kernel
# ---------------------------------------------------------------------------

def _make_rowsum_kernel(n_total, n_tile, has_tail, use_mxu):
    """Row-sum over the sequence axis of a (1, n_tile, Dt) block, accumulating
    in f32 directly into the resident (1, 1, Dt) output block."""

    def kernel(x_ref, out_ref):
        n_idx = pl.program_id(2)           # reduction axis (last grid axis)

        @pl.when(n_idx == 0)
        def _init():
            out_ref[...] = jnp.zeros_like(out_ref)

        x_blk = x_ref[...]                 # (1, n_tile, Dt)
        if has_tail:
            # Mask rows past the true sequence length on the (partial) tail
            # tile; `where` (not multiply) so OOB garbage/NaN never leaks in.
            rows = jax.lax.broadcasted_iota(jnp.int32, x_blk.shape, 1)
            limit = n_total - n_idx * n_tile
            x_blk = jnp.where(rows < limit, x_blk, jnp.zeros_like(x_blk))

        if use_mxu:
            # Sub-f32 inputs: contract the sequence axis against ones on the
            # MXU (f32 accumulation inside the MXU), so no f32 copy of the
            # tile is materialized and the VPU stays free.
            ones = jnp.ones((8, n_tile), dtype=x_blk.dtype)
            acc8 = jnp.dot(ones, x_blk[0], preferred_element_type=jnp.float32)
            out_ref[...] += acc8[0:1, :][None]          # (1, 1, Dt)
        else:
            # f32 inputs: plain sublane reduce, accumulate in place.
            out_ref[...] += jnp.sum(x_blk, axis=1, keepdims=True)

    return kernel


# ---------------------------------------------------------------------------
# Wrapper
# ---------------------------------------------------------------------------

def simple_global_attention(x, global_query=None, w_keys=None, b_keys=None,
                            *, max_tile_bytes=None):
    """Forward pass of SimpleGlobalAttention.

    x: (B, N, D). global_query / w_keys / b_keys are accepted for API parity
    with the PyTorch module but cannot influence the output (the softmax over
    the size-1 query axis makes every attention weight exactly 1.0), so the
    result is sum(x, axis=1, keepdims=True), returned as (B, 1, D).

    `max_tile_bytes` optionally overrides the per-buffer tile budget (testing /
    tuning knob); by default it is derived from the TPU generation.
    """
    B, N, D = x.shape
    orig_dtype = x.dtype
    itemsize = jnp.dtype(x.dtype).itemsize
    # Sub-32-bit dtypes pack along sublanes: keep sequence tiles at the packed
    # granularity (f32 -> 8, bf16 -> 16, int8/fp8 -> 32) to avoid relayouts.
    align = {4: 8, 2: 16, 1: 32}.get(itemsize, 8)

    # Lane densification: if D is not a multiple of 128, fold g consecutive
    # sequence rows into one lane-dense row of width g*D (a free, contiguous
    # reshape) so tiles are not lane-padded to 128. The tiny (B, 1, g, D)
    # fold-back sum happens in plain JAX after the kernel.
    g = 1
    if D % 128 != 0:
        g_min = 128 // math.gcd(D, 128)
        if g_min > 1 and N % g_min == 0:
            g = g_min
    n_eff, d_eff = N // g, D * g
    x_eff = x.reshape(B, n_eff, d_eff)

    per_buf, vmem_limit = _chip_tile_budget()
    if max_tile_bytes is not None:
        per_buf = int(max_tile_bytes)

    # Lane-axis tile: full width unless it busts the budget, or B == 1 and we
    # can split D so the second "parallel" axis still feeds both v7x cores.
    dt_cap = max(per_buf // (align * itemsize), 128)
    if B == 1:
        dt_cap = min(dt_cap, max(d_eff // 2, 1))
    d_tile = _pick_lane_tile(d_eff, dt_cap)

    # Sequence (reduction) tile under the per-buffer budget.
    nt_cap = max(per_buf // max(d_tile * itemsize, 1), align)
    n_tile = _pick_seq_tile(n_eff, align, nt_cap)
    has_tail = (n_eff % n_tile) != 0

    grid = (B, d_eff // d_tile, pl.cdiv(n_eff, n_tile))
    kernel = _make_rowsum_kernel(n_eff, n_tile, has_tail,
                                 use_mxu=(orig_dtype != jnp.float32))

    out3 = pl.pallas_call(
        kernel,
        out_shape=jax.ShapeDtypeStruct((B, 1, d_eff), jnp.float32),
        grid_spec=pltpu.PrefetchScalarGridSpec(
            num_scalar_prefetch=0,
            grid=grid,
            in_specs=[pl.BlockSpec((1, n_tile, d_tile),
                                   lambda b, d, n: (b, n, d))],
            # Lane-dense output block, resident across the reduction axis
            # (same block index for every n) -> in-place f32 accumulator.
            out_specs=pl.BlockSpec((1, 1, d_tile), lambda b, d, n: (b, 0, d)),
        ),
        compiler_params=pltpu.CompilerParams(
            dimension_semantics=("parallel", "parallel", "arbitrary"),
            vmem_limit_bytes=vmem_limit,
        ),
    )(x_eff)

    if g > 1:
        out3 = out3.reshape(B, 1, g, D).sum(axis=2)   # fold densified rows
    return out3.astype(orig_dtype)                    # (B, 1, D)


# ---------------------------------------------------------------------------
# Reference & tests
# ---------------------------------------------------------------------------

def _reference(x, global_query, w_keys, b_keys):
    """Faithful (un-simplified) f32 reference of the PyTorch forward."""
    xf = x.astype(jnp.float32)
    D = x.shape[-1]
    scale = float(D) ** (-0.5)
    keys = jnp.einsum("bnd,kd->bnk", xf, w_keys) + b_keys       # (B, N, K)
    dots = jnp.einsum("qk,bnk->bqn", global_query, keys)        # (B, 1, N)
    attn = jax.nn.softmax(dots * scale, axis=-2)                # size-1 axis
    return jnp.einsum("bqn,bnd->bqd", attn, xf)                 # (B, 1, D)


def _run_case(name, key, B, N, D, K, dtype, max_tile_bytes=None,
              rtol=1e-4, atol=1e-4):
    k_x, k_q, k_w, k_b = jax.random.split(key, 4)
    x = jax.random.normal(k_x, (B, N, D), dtype=jnp.float32).astype(dtype)
    gq = jax.random.normal(k_q, (1, K), dtype=jnp.float32)
    wk = jax.random.normal(k_w, (K, D), dtype=jnp.float32) * 0.1
    bk = jax.random.normal(k_b, (K,), dtype=jnp.float32) * 0.1

    out = simple_global_attention(x, gq, wk, bk, max_tile_bytes=max_tile_bytes)
    out = jax.block_until_ready(out)
    ref = _reference(x, gq, wk, bk)

    assert out.shape == (B, 1, D), f"{name}: bad output shape {out.shape}"
    ok = jnp.allclose(out.astype(jnp.float32), ref, rtol=rtol, atol=atol)
    assert ok, f"{name}: mismatch vs reference"


if __name__ == "__main__":
    root = jax.random.PRNGKey(0)
    k1, k2, k3 = jax.random.split(root, 3)

    # Main module-sized case: D=32 triggers lane densification (g=4 -> 128).
    _run_case("f32_densified", k1, B=2, N=8, D=32, K=16, dtype=jnp.float32)

    # Multi-step reduction with a masked tail tile (N=13 has no aligned
    # divisor under the forced tiny tile budget).
    _run_case("f32_masked_tail", k2, B=2, N=13, D=128, K=16,
              dtype=jnp.float32, max_tile_bytes=4096)

    # bf16 input: MXU ones-contraction path with f32 accumulation.
    _run_case("bf16_mxu", k3, B=2, N=32, D=128, K=16, dtype=jnp.bfloat16,
              max_tile_bytes=4096, rtol=2e-2, atol=2e-2)

    print("KERNEL_OK")
</pallas_src>

<mosaic_0001>
module attributes {stable_mosaic.version = 11 : i64} {
  func.func @kernel(%arg0: i32, %arg1: i32, %arg2: i32, %arg3: memref<1x2x128xf32, #tpu.memory_space<vmem>>, %arg4: memref<1x1x128xf32, #tpu.memory_space<vmem>>) attributes {dimension_semantics = [#tpu.dimension_semantics<parallel>, #tpu.dimension_semantics<parallel>, #tpu.dimension_semantics<arbitrary>], iteration_bounds = array<i64: 2, 1, 1>, scalar_prefetch = 0 : i64, scratch_operands = 0 : i64, tpu.core_type = #tpu.core_type<tc>, window_params = [{transform_indices = @transform_0, window_bounds = array<i64: 1, 2, 128>}, {transform_indices = @transform_1, window_bounds = array<i64: 1, 1, 128>}]} {
    %c0_i32 = arith.constant 0 : i32
    %0 = arith.cmpi eq, %arg2, %c0_i32 : i32
    %1 = arith.extui %0 : i1 to i32
    %c0_i32_0 = arith.constant 0 : i32
    %2 = arith.cmpi ne, %1, %c0_i32_0 : i32
    scf.if %2 {
      %cst_9 = arith.constant 0.000000e+00 : f32
      %9 = vector.broadcast %cst_9 : f32 to vector<1x1x128xf32>
      %c0_10 = arith.constant 0 : index
      %c0_11 = arith.constant 0 : index
      %c0_12 = arith.constant 0 : index
      %10 = vector.load %arg4[%c0_10, %c0_11, %c0_12] : memref<1x1x128xf32, #tpu.memory_space<vmem>>, vector<1x1x128xf32>
      tpu.vector_store %arg4[%c0_10, %c0_11, %c0_12], %9 {strides = array<i32>} : memref<1x1x128xf32, #tpu.memory_space<vmem>>, vector<1x1x128xf32>,
    } else {
    }
    %c0 = arith.constant 0 : index
    %c0_1 = arith.constant 0 : index
    %c0_2 = arith.constant 0 : index
    %3 = vector.load %arg3[%c0, %c0_1, %c0_2] : memref<1x2x128xf32, #tpu.memory_space<vmem>>, vector<1x2x128xf32>
    %c0_3 = arith.constant 0 : index
    %c0_4 = arith.constant 0 : index
    %c0_5 = arith.constant 0 : index
    %4 = vector.load %arg4[%c0_3, %c0_4, %c0_5] : memref<1x1x128xf32, #tpu.memory_space<vmem>>, vector<1x1x128xf32>
    %cst = arith.constant dense<0.000000e+00> : vector<1x128xf32>
    %5 = vector.multi_reduction <add>, %3, %cst [1] : vector<1x2x128xf32> to vector<1x128xf32>
    %6 = vector.shape_cast %5 : vector<1x128xf32> to vector<1x1x128xf32>
    %7 = arith.addf %4, %6 : vector<1x1x128xf32>
    %c0_6 = arith.constant 0 : index
    %c0_7 = arith.constant 0 : index
    %c0_8 = arith.constant 0 : index
    %8 = vector.load %arg4[%c0_6, %c0_7, %c0_8] : memref<1x1x128xf32, #tpu.memory_space<vmem>>, vector<1x1x128xf32>
    tpu.vector_store %arg4[%c0_6, %c0_7, %c0_8], %7 {strides = array<i32>} : memref<1x1x128xf32, #tpu.memory_space<vmem>>, vector<1x1x128xf32>,
    return
  }
  func.func @transform_0(%arg0: i32, %arg1: i32, %arg2: i32) -> (i32, i32, i32) {
    %c0_i32 = arith.constant 0 : i32
    return %arg0, %arg2, %arg1 : i32, i32, i32
  }
  func.func @transform_1(%arg0: i32, %arg1: i32, %arg2: i32) -> (i32, i32, i32) {
    %c0_i32 = arith.constant 0 : i32
    %c0_i32_0 = arith.constant 0 : i32
    return %arg0, %c0_i32, %arg1 : i32, i32, i32
  }
}

</mosaic_0001>

<llo_original>
// kernel: tpu_custom_call.1
$region0: #{tpu_custom_call.1}
  #allocation0 [shape = 'u32[]', space=smem, size = 0x4, offset = 0x4, fixed_abs, tag = 'smem constant byte address 0x4 - core index']
  #allocation1 [shape = 'u32[144,128]{1,0:T(1,128)}', space=vmem, size = 0x12000, scoped, tag = 'internal scratch']
  %s0 = inlined_call_operand.hbm [shape: f32[2,2,128], index: 0, kind: input, shape index: {}]
  %s1 = inlined_call_operand.hbm [shape: f32[2,1,128], index: 1, kind: output, shape index: {}]
  %s2 = sld [smem:[#allocation0]]
  $region45: #{tpu_custom_call.1} parent=0
    _
  %s4 = ssub.s32 1, %s2
  %s5 = scalar_select 0, %s4, %s2
  $region1: #{tpu_custom_call.1} parent=0
    #allocation2 [shape = 'u8[2048]{0}', space=vmem, size = 0x800, scoped, tag = 'input window, operand 0']
    #allocation3 [shape = 's32[2]{0}', space=sflag, size = 0x8, scoped, tag = 'scoped memory for tpu_custom_call.1']
    #allocation4 [shape = 's32[2]{0}', space=sflag, size = 0x8, scoped, tag = 'scoped memory for tpu_custom_call.1']
    #allocation5 [shape = 'u8[1024]{0}', space=vmem, size = 0x400, scoped, tag = 'output window, operand 0']
    %6 = vsyncpa [#allocation3], 0
    %s7 = scalar_lea.sflag [#allocation3], 1
    %8 = vsyncpa %s7, 0
    %9 = vsyncpa [#allocation4], 0
    %s10 = scalar_lea.sflag [#allocation4], 1
    %11 = vsyncpa %s10, 0
    loop: start=0, step=1, limit=4
    $region2: #{tpu_custom_call.1} parent=1 // loop_pre_header
      _
    $region3: #{tpu_custom_call.1} parent=1 // loop_header
      %s13 = sphi 0, %s17
      %p14 = scmp.ge.s32.totalorder %s13, 4
      %s20 = sphi 0, %s39
      %s21 = sphi 0, %s35
      %s22 = sphi 0, %s31
      %s23 = sphi 0, %s20
      %s24 = sphi 0, %s21
      %s25 = sphi 0, %s22
      %s26 = sphi 0, %s23
      %s27 = sphi 0, %s24
      %s28 = sphi 0, %s25
      %s46 = sphi 0, %s48
      %s49 = sphi 0, %s46
      %s50 = sphi 0, %s49
      %s66 = sphi 0, %s50
      %s74 = sphi 0, %s76
      %s77 = sphi 0, %s74
      %s78 = sphi 0, %s77
      %s94 = sphi 0, %s78
    $region4: #{tpu_custom_call.1} parent=1 // loop_header_branch
      %16 = sbr.rel (%p14) target = $region8
    $region5: #{tpu_custom_call.1} parent=1 // loop_body
      %s18 = ssub.s32 %s13, 1
      %s19 = ssub.s32 %s13, 2
      %s29 = sadd.s32 1, %s22
      %p30 = scmp.ge.s32.totalorder %s29, 1
      %s31 = scalar_select %p30, 0, %s29
      %s32 = sadd.s32 1, %s21
      %s33 = scalar_select %p30, %s32, %s21
      %p34 = scmp.ge.s32.totalorder %s33, 1
      %s35 = scalar_select %p34, 0, %s33
      %s36 = sadd.s32 1, %s20
      %s37 = scalar_select %p34, %s36, %s20
      %p38 = scmp.ge.s32.totalorder %s37, 2
      %s39 = scalar_select %p38, 0, %s37
      %s40 = ssub.s32 %s20, %s39
      %s41 = ssub.s32 %s22, %s31
      %s42 = sor.u32 %s40, %s41
      %s43 = ssub.s32 %s21, %s35
      %s44 = sor.u32 %s42, %s43
      %p45 = scmp.eq.s32.totalorder %s44, 0
      %s47 = sadd.s32 %s46, 1
      %s48 = scalar_select %p45, %s46, %s47
      %p51 = pneg %p45
      %p52 = scmp.eq.s32.totalorder %s13, 1
      %p53 = por %p51, %p52
      %p54 = scmp.ne.s32.totalorder %s46, %s49
      %p55 = scmp.eq.s32.totalorder %s13, 0
      %p56 = por %p54, %p55
      %p57 = scmp.ne.s32.totalorder %s46, %s49
      %p58 = scmp.eq.s32.totalorder %s18, 1
      %p59 = por %p57, %p58
      %p60 = scmp.ne.s32.totalorder %s49, %s50
      %p61 = scmp.eq.s32.totalorder %s18, 0
      %p62 = por %p60, %p61
      %p63 = scmp.ne.s32.totalorder %s49, %s50
      %p64 = scmp.eq.s32.totalorder %s19, 1
      %p65 = por %p63, %p64
      %p67 = scmp.ne.s32.totalorder %s50, %s66
      %p68 = scmp.eq.s32.totalorder %s19, 0
      %p69 = por %p67, %p68
      %s70 = ssub.s32 %s20, %s39
      %s71 = ssub.s32 %s21, %s35
      %s72 = sor.u32 %s70, %s71
      %p73 = scmp.eq.s32.totalorder %s72, 0
      %s75 = sadd.s32 %s74, 1
      %s76 = scalar_select %p73, %s74, %s75
      %p79 = pneg %p73
      %p80 = scmp.eq.s32.totalorder %s13, 1
      %p81 = por %p79, %p80
      %p82 = scmp.ne.s32.totalorder %s74, %s77
      %p83 = scmp.eq.s32.totalorder %s13, 0
      %p84 = por %p82, %p83
      %p85 = scmp.ne.s32.totalorder %s74, %s77
      %p86 = scmp.eq.s32.totalorder %s18, 1
      %p87 = por %p85, %p86
      %p88 = scmp.ne.s32.totalorder %s77, %s78
      %p89 = scmp.eq.s32.totalorder %s18, 0
      %p90 = por %p88, %p89
      %p91 = scmp.ne.s32.totalorder %s77, %s78
      %p92 = scmp.eq.s32.totalorder %s19, 1
      %p93 = por %p91, %p92
      %p95 = scmp.ne.s32.totalorder %s78, %s94
      %p96 = scmp.eq.s32.totalorder %s19, 0
      %p97 = por %p95, %p96
      %p98 = scmp.le.s32.totalorder 1, %s13
      %p99 = scmp.lt.s32.totalorder %s13, 3
      %p100 = pnand %p98, %p99
      %p101 = pneg %p100
      // Predicated region
      $region9: #{tpu_custom_call.1} parent=5 // pred_check
        _
      $region10: #{tpu_custom_call.1} parent=5 // pred_check_branch
        %103 = sbr.rel (%p100) target = $region12
      $region11: #{tpu_custom_call.1} parent=5 // pred_region
        %s104 = ssub.s32 %s13, 1
      $region12: #{tpu_custom_call.1} parent=5 // pred_fallthru
        _
      %p105 = scmp.lt.s32.totalorder %s13, 2
      // Predicated region
      $region13: #{tpu_custom_call.1} parent=5 // pred_check
        %p106 = pneg %p105
      $region14: #{tpu_custom_call.1} parent=5 // pred_check_branch
        %108 = sbr.rel (%p106) target = $region16
      $region15: #{tpu_custom_call.1} parent=5 // pred_region
        // Predicated region
        $region17: #{tpu_custom_call.1} parent=15 // pred_check
          %p109 = pneg %p56
        $region18: #{tpu_custom_call.1} parent=15 // pred_check_branch
          %111 = sbr.rel (%p109) target = $region20
        $region19: #{tpu_custom_call.1} parent=15 // pred_region
          %s112 = sand.u32 %s46, 1
          %s113 = scalar_lea.sflag [#allocation3], %s112
          %s114 = sand.u32 %s46, 1
          %s115 = smul.addr %s114, 2
          %s116 = scalar_lea.vmem [#allocation2], %s115
          %s118 = ssub.s32 32, 32
          %119 = vsyncadd %s113, %s118
          %s120 = sadd.s32 %s21, %s22
          %s121 = sadd.s32 %s120, %s20
          %s122 = smul.addr %s121, 32
          %s123 = scalar_lea.hbm %s0, %s122
          %s125 = sshll.u32 %s116, 4
          %s126 = int_to_ptr.vmem [resolvable:$true] %s125
          %128 = dma.hbm_to_vmem [thread:$0]  %s123, 32, %s126, %s113
        $region20: #{tpu_custom_call.1} parent=15 // pred_fallthru
          _
      $region16: #{tpu_custom_call.1} parent=5 // pred_fallthru
        _
      %p129 = scmp.le.s32.totalorder 1, %s13
      %p130 = scmp.lt.s32.totalorder %s13, 3
      %p131 = pnand %p129, %p130
      %p132 = pneg %p131
      // Predicated region
      $region21: #{tpu_custom_call.1} parent=5 // pred_check
        _
      $region22: #{tpu_custom_call.1} parent=5 // pred_check_branch
        %134 = sbr.rel (%p131) target = $region24
      $region23: #{tpu_custom_call.1} parent=5 // pred_region
        %s135 = ssub.s32 %s13, 1
        %s136 = sand.u32 %s49, 1
        %s137 = scalar_lea.sflag [#allocation3], %s136
        %s138 = sand.u32 %s49, 1
        %s139 = smul.addr %s138, 2
        %s140 = scalar_lea.vmem [#allocation2], %s139
        // Predicated region
        $region25: #{tpu_custom_call.1} parent=23 // pred_check
          %p141 = pneg %p62
        $region26: #{tpu_custom_call.1} parent=23 // pred_check_branch
          %143 = sbr.rel (%p141) target = $region28
        $region27: #{tpu_custom_call.1} parent=23 // pred_region
          %144 = dma.done %s137, 32
        $region28: #{tpu_custom_call.1} parent=23 // pred_fallthru
          _
        %s145 = sand.u32 %s49, 1
        %s146 = scalar_lea.sflag [#allocation3], %s145
        %s147 = sand.u32 %s49, 1
        %s148 = smul.addr %s147, 2
        %s149 = scalar_lea.vmem [#allocation2], %s148
        %p150 = pneg %p62
        %p151 = pneg %p59
        %p152 = pneg %p90
        %p153 = pneg %p87
        %s154 = sand.u32 %s77, 1
        %s155 = scalar_lea.sflag [#allocation4], %s154
        %s156 = sand.u32 %s77, 1
        %s157 = scalar_lea.vmem [#allocation5], %s156
        %p158 = scmp.eq.s32.totalorder %s25, 0
        // Predicated region
        $region29: #{tpu_custom_call.1} parent=23 // pred_check
          %p159 = pneg %p158
        $region30: #{tpu_custom_call.1} parent=23 // pred_check_branch
          %161 = sbr.rel (%p159) target = $region32
        $region31: #{tpu_custom_call.1} parent=23 // pred_region
          %162 = vst [vmem:[%s157] sm:$0x1] 0.0
        $region32: #{tpu_custom_call.1} parent=23 // pred_fallthru
          _
        %v163 = vld [vmem:[%s140] sm:$0x3]
        %v164 = vld [vmem:[%s157] sm:$0x1]
        %vm165 = vcmask 1041408
        %v166 = vsel %vm165, %v163, 0.0
        %v167 = vrot.slane %v166, 4
        %v168 = vadd.f32 %v166, %v167
        %v169 = vrot.slane %v168, 2
        %v170 = vadd.f32 %v168, %v169
        %v171 = vrot.slane %v170, 1
        %v172 = vadd.f32 %v170, %v171
        %v173 = vadd.f32 %v164, %v172
        %174 = vst [vmem:[%s157] sm:$0x1] %v173
        %s175 = sand.u32 %s77, 1
        %s176 = scalar_lea.sflag [#allocation4], %s175
        %s177 = sand.u32 %s77, 1
        %s178 = scalar_lea.vmem [#allocation5], %s177
        // Predicated region
        $region33: #{tpu_custom_call.1} parent=23 // pred_check
          %p179 = pneg %p87
        $region34: #{tpu_custom_call.1} parent=23 // pred_check_branch
          %181 = sbr.rel (%p179) target = $region36
        $region35: #{tpu_custom_call.1} parent=23 // pred_region
          %s183 = ssub.s32 16, 16
          %184 = vsyncadd %s176, %s183
          %s185 = sadd.s32 %s24, %s23
          %s186 = smul.addr %s185, 16
          %s187 = scalar_lea.hbm %s1, %s186
          %s189 = sshll.u32 %s178, 4
          %s190 = int_to_ptr.vmem [resolvable:$true] %s189
          %192 = dma.vmem_to_hbm [thread:$0]  %s190, 16, %s187, %s176
        $region36: #{tpu_custom_call.1} parent=23 // pred_fallthru
          _
      $region24: #{tpu_custom_call.1} parent=5 // pred_fallthru
        _
      %p193 = scmp.le.s32.totalorder 2, %s13
      // Predicated region
      $region37: #{tpu_custom_call.1} parent=5 // pred_check
        %p194 = pneg %p193
      $region38: #{tpu_custom_call.1} parent=5 // pred_check_branch
        %196 = sbr.rel (%p194) target = $region40
      $region39: #{tpu_custom_call.1} parent=5 // pred_region
        %s197 = ssub.s32 %s13, 2
        // Predicated region
        $region41: #{tpu_custom_call.1} parent=39 // pred_check
          %p198 = pneg %p93
        $region42: #{tpu_custom_call.1} parent=39 // pred_check_branch
          %200 = sbr.rel (%p198) target = $region44
        $region43: #{tpu_custom_call.1} parent=39 // pred_region
          %s201 = sand.u32 %s78, 1
          %s202 = scalar_lea.sflag [#allocation4], %s201
          %s203 = sand.u32 %s78, 1
          %s204 = scalar_lea.vmem [#allocation5], %s203
          %205 = dma.done %s202, 16
        $region44: #{tpu_custom_call.1} parent=39 // pred_fallthru
          _
      $region40: #{tpu_custom_call.1} parent=5 // pred_fallthru
        _
    $region6: #{tpu_custom_call.1} parent=1 // loop_footer
      %s17 = sadd.s32 1, %s13
    $region7: #{tpu_custom_call.1} parent=1 // loop_footer_branch
      %12 = sbr.rel target = $region3
    $region8: #{tpu_custom_call.1} parent=1 // loop_exit
      _
    %206 = vsyncpa [#allocation3], 1
    %s207 = scalar_lea.sflag [#allocation3], 1
    %208 = vsyncpa %s207, 1
    %209 = vsyncpa [#allocation4], 1
    %s210 = scalar_lea.sflag [#allocation4], 1
    %211 = vsyncpa %s210, 1

</llo_original>
